<compile_context>
chip_gen: v5e
topology: v5e:2x2
jax: 0.10.0
libtpu: 0.0.40
codegen_flags: <defaults>
</compile_context>

<pallas_src>
import functools

import jax
import jax.numpy as jnp
from jax import lax
from jax.experimental import pallas as pl
from jax.experimental.pallas import tpu as pltpu


def _round_up(x, m):
    return (x + m - 1) // m * m


def _pick_tile_rows(n_rows, feat_cols, idx_cols, gather_cols, itemsize, vec_bytes,
                    *, target_block_bytes=4 * 1024 * 1024,
                    vmem_block_budget=28 * 1024 * 1024):
    """Rows per grid step: ~4 MiB HBM feature block, capped by an explicit VMEM budget.

    The VMEM budget accounts for lane padding (a (tr, P) int32 idx block occupies a full
    128-lane row in VMEM), double buffering of the in/out/idx streams, and the f32 one-hot
    and gather intermediates the kernel materializes.
    """
    sublane = max(8, 32 // itemsize)                     # 8 f32 / 16 bf16 / 32 int8
    lane_pad = lambda cols, isz: _round_up(max(cols, 1), 128) * isz
    feat_row = lane_pad(feat_cols, itemsize)             # feature row, lane-padded, VMEM
    idx_row = lane_pad(idx_cols, 4)                      # idx row pads to 128 lanes
    oh_row = lane_pad(gather_cols, 4)                    # f32 one-hot intermediate
    g_row = lane_pad(feat_cols, 4)                       # f32 gather-result intermediate
    per_row = 4 * feat_row + 2 * idx_row + oh_row + g_row  # 2x(in)+2x(out)+2x(idx)+scratch
    budget = max(vmem_block_budget - 2 * vec_bytes, per_row * sublane)
    rows = min(target_block_bytes // max(feat_cols * itemsize, 1),
               budget // per_row)
    rows = max(sublane, (rows // sublane) * sublane)
    rows = min(rows, _round_up(n_rows, sublane))
    return max(sublane, int(rows))


def _mask_kernel(idx_ref, feat_ref, vec_ref, out_ref):
    """One-hot MXU gather + elementwise multiply.

    idx:(tr, P) int32, feat/out:(tr, L), vec:(P*B, L).
    Unpacked path: P == 1, L == C, vec == vecter.
    Packed path:   L == 128, vec is block-diagonal: vec[p*B + b, p*C:(p+1)*C] = vecter[b].
    """
    idx = idx_ref[...]                                   # (tr, P)
    vec = vec_ref[...]                                   # (P*B, L)
    tr, P = idx.shape
    B = vec.shape[0] // P
    iota_b = lax.broadcasted_iota(jnp.int32, (tr, B), 1)
    # Fused one-hot over the (p, b) axis: column p*B + b is 1 iff idx[:, p] == b.
    parts = [(idx[:, p:p + 1] == iota_b).astype(vec.dtype) for p in range(P)]
    one_hot = parts[0] if P == 1 else jnp.concatenate(parts, axis=1)   # (tr, P*B)
    g = jnp.dot(one_hot, vec, preferred_element_type=jnp.float32)      # gathered vecter rows
    # Multiply in the feature dtype (no full-tile f32 upcast of feat).
    out_ref[...] = feat_ref[...] * g.astype(out_ref.dtype)


@functools.partial(jax.jit,
                   static_argnames=("block_rows", "donate_features", "use_core_parallel"))
def global_mask_layer(features, point_idx, vecter, *, block_rows=None,
                      donate_features=False, use_core_parallel=False):
    """GlobalMaskLayer forward: features[N,C] * vecter[point_idx], point_idx in [0, B)."""
    N, C = features.shape
    B, C2 = vecter.shape
    assert C == C2, "features and vecter must have the same channel count"
    point_idx = point_idx.astype(jnp.int32)
    itemsize = features.dtype.itemsize

    # Lane-dense packing only when it is a free reshape (no extra HBM pass):
    # pack P = 128 // C points per 128-lane row so output stores are full-lane vst.
    pack = (C < 128) and (128 % C == 0) and N > 0 and (N % (128 // C) == 0)

    if pack:
        P = 128 // C
        n_rows = N // P
        L = P * C                                               # = 128
        feats_in = features.reshape(n_rows, L)                  # free reshape
        idx_in = point_idx.reshape(n_rows, P)                   # free reshape
        # Block-diagonal expanded vecter (P*B, 128): row p*B+b holds vecter[b] in lanes
        # [p*C, (p+1)*C). Tiny; built once per call.
        eye = jnp.eye(P, dtype=vecter.dtype)
        vec_in = jnp.einsum("pq,bc->pbqc", eye, vecter).reshape(P * B, L)
    else:
        P = 1
        n_rows, L = N, C
        feats_in = features
        idx_in = point_idx.reshape(N, 1)
        vec_in = vecter

    vec_bytes = vec_in.shape[0] * _round_up(L, 128) * vec_in.dtype.itemsize
    tr = block_rows if block_rows is not None else _pick_tile_rows(
        n_rows, L, P, P * B, itemsize, vec_bytes)
    grid = (pl.cdiv(n_rows, tr),)   # ragged last block: OOB writes masked, no pad / slice

    dim_sem = (pltpu.CORE_PARALLEL,) if use_core_parallel else ("parallel",)

    out = pl.pallas_call(
        _mask_kernel,
        out_shape=jax.ShapeDtypeStruct((n_rows, L), features.dtype),
        grid_spec=pltpu.PrefetchScalarGridSpec(
            num_scalar_prefetch=0,
            grid=grid,
            in_specs=[
                pl.BlockSpec((tr, P), lambda i: (i, 0)),        # per-point batch indices
                pl.BlockSpec((tr, L), lambda i: (i, 0)),        # point features
                pl.BlockSpec((P * B, L), lambda i: (0, 0)),     # constant vecter table
            ],
            out_specs=pl.BlockSpec((tr, L), lambda i: (i, 0)),
        ),
        compiler_params=pltpu.CompilerParams(
            dimension_semantics=dim_sem,
            vmem_limit_bytes=48 * 1024 * 1024),
        input_output_aliases=({1: 0} if donate_features else {}),
    )(idx_in, feats_in, vec_in)

    return out.reshape(N, C) if pack else out


if __name__ == "__main__":
    # Small deterministic examples consistent with a sparse point tensor.
    # N = active points, C = feature channels, B = batch samples, dimension = 3.
    root = jax.random.PRNGKey(0)
    dimension = 3
    tests = [
        ("packed_small_B", 24, 32, 2),     # C<128 -> lane-packed, fused one-hot matmul
        ("unpacked_ragged", 29, 128, 3),   # C>=128, ragged last block (no pad/slice)
        ("packed_large_B", 40, 64, 32),    # packed layout, large B
        ("unpacked_large_B", 21, 96, 32),  # C does not divide 128 -> unpacked layout
    ]
    for t, (name, N, C, B) in enumerate(tests):
        kf, kv, ki = jax.random.split(jax.random.fold_in(root, t), 3)
        features = jax.random.normal(kf, (N, C), dtype=jnp.float32)
        vecter = jax.random.normal(kv, (B, C), dtype=jnp.float32)
        # spatial_locations: [N, dimension + 1]; last column = batch index in [0, B)
        coords = jax.random.randint(ki, (N, dimension), 0, 16, dtype=jnp.int32)
        batch_col = jax.random.randint(jax.random.fold_in(ki, 1), (N, 1), 0, B,
                                       dtype=jnp.int32)
        spatial_locations = jnp.concatenate([coords, batch_col], axis=1)
        point_idx = spatial_locations[:, -1]

        out = jax.block_until_ready(global_mask_layer(features, point_idx, vecter))
        ref = features * vecter[point_idx]
        assert out.shape == (N, C), name
        assert jnp.allclose(out, ref, atol=1e-5, rtol=1e-5), name

    # TODO(synk): SparseConvNetTensor metadata / spatial_size passthrough is bookkeeping
    # outside the numeric hot path and is not represented here.
    print("KERNEL_OK")
</pallas_src>

<mosaic_0001>
module attributes {stable_mosaic.version = 11 : i64} {
  func.func @_mask_kernel(%arg0: i32, %arg1: memref<8x4xi32, #tpu.memory_space<vmem>>, %arg2: memref<8x128xf32, #tpu.memory_space<vmem>>, %arg3: memref<8x128xf32, #tpu.memory_space<vmem>>, %arg4: memref<8x128xf32, #tpu.memory_space<vmem>>) attributes {dimension_semantics = [#tpu.dimension_semantics<parallel>], iteration_bounds = array<i64: 1>, scalar_prefetch = 0 : i64, scratch_operands = 0 : i64, tpu.core_type = #tpu.core_type<tc>, window_params = [{transform_indices = @transform_0, window_bounds = array<i64: 8, 4>}, {transform_indices = @transform_1, window_bounds = array<i64: 8, 128>}, {pipeline_mode = #tpu.pipeline_mode<synchronous>, transform_indices = @transform_2, window_bounds = array<i64: 8, 128>}, {transform_indices = @transform_3, window_bounds = array<i64: 8, 128>}]} {
    %c0 = arith.constant 0 : index
    %c0_0 = arith.constant 0 : index
    %0 = vector.load %arg1[%c0, %c0_0] : memref<8x4xi32, #tpu.memory_space<vmem>>, vector<8x4xi32>
    %c0_1 = arith.constant 0 : index
    %c0_2 = arith.constant 0 : index
    %1 = vector.load %arg3[%c0_1, %c0_2] : memref<8x128xf32, #tpu.memory_space<vmem>>, vector<8x128xf32>
    %2 = tpu.iota {dimensions = array<i32: 1>} : vector<8x2xi32>
    %3 = vector.extract_strided_slice %0 {offsets = [0, 0], sizes = [8, 1], strides = [1, 1]} : vector<8x4xi32> to vector<8x1xi32>
    %4 = vector.broadcast %3 : vector<8x1xi32> to vector<8x2xi32>
    %5 = arith.cmpi eq, %4, %2 : vector<8x2xi32>
    %6 = arith.extui %5 : vector<8x2xi1> to vector<8x2xi32>
    %7 = arith.sitofp %6 : vector<8x2xi32> to vector<8x2xf32>
    %8 = vector.extract_strided_slice %0 {offsets = [0, 1], sizes = [8, 1], strides = [1, 1]} : vector<8x4xi32> to vector<8x1xi32>
    %9 = vector.broadcast %8 : vector<8x1xi32> to vector<8x2xi32>
    %10 = arith.cmpi eq, %9, %2 : vector<8x2xi32>
    %11 = arith.extui %10 : vector<8x2xi1> to vector<8x2xi32>
    %12 = arith.sitofp %11 : vector<8x2xi32> to vector<8x2xf32>
    %13 = vector.extract_strided_slice %0 {offsets = [0, 2], sizes = [8, 1], strides = [1, 1]} : vector<8x4xi32> to vector<8x1xi32>
    %14 = vector.broadcast %13 : vector<8x1xi32> to vector<8x2xi32>
    %15 = arith.cmpi eq, %14, %2 : vector<8x2xi32>
    %16 = arith.extui %15 : vector<8x2xi1> to vector<8x2xi32>
    %17 = arith.sitofp %16 : vector<8x2xi32> to vector<8x2xf32>
    %18 = vector.extract_strided_slice %0 {offsets = [0, 3], sizes = [8, 1], strides = [1, 1]} : vector<8x4xi32> to vector<8x1xi32>
    %19 = vector.broadcast %18 : vector<8x1xi32> to vector<8x2xi32>
    %20 = arith.cmpi eq, %19, %2 : vector<8x2xi32>
    %21 = arith.extui %20 : vector<8x2xi1> to vector<8x2xi32>
    %22 = arith.sitofp %21 : vector<8x2xi32> to vector<8x2xf32>
    %23 = tpu.concatenate %7, %12, %17, %22 in 1 : vector<8x2xf32>, vector<8x2xf32>, vector<8x2xf32>, vector<8x2xf32> -> vector<8x8xf32>
    %cst = arith.constant dense<0.000000e+00> : vector<8x128xf32>
    %24 = tpu.matmul %23, %1, %cst {dimension_numbers = #tpu.dot_dimension_numbers<[1], [0], [0], [1], [0, 0, 1, 1], [], []>} : vector<8x8xf32>, vector<8x128xf32>, vector<8x128xf32> -> vector<8x128xf32>
    %c0_3 = arith.constant 0 : index
    %c0_4 = arith.constant 0 : index
    %25 = vector.load %arg2[%c0_3, %c0_4] : memref<8x128xf32, #tpu.memory_space<vmem>>, vector<8x128xf32>
    %26 = arith.mulf %25, %24 : vector<8x128xf32>
    %c0_5 = arith.constant 0 : index
    %c0_6 = arith.constant 0 : index
    %27 = vector.load %arg4[%c0_5, %c0_6] : memref<8x128xf32, #tpu.memory_space<vmem>>, vector<8x128xf32>
    tpu.vector_store %arg4[%c0_5, %c0_6], %26 {strides = array<i32>} : memref<8x128xf32, #tpu.memory_space<vmem>>, vector<8x128xf32>,
    return
  }
  func.func @transform_0(%arg0: i32) -> (i32, i32) {
    %c0_i32 = arith.constant 0 : i32
    %c0_i32_0 = arith.constant 0 : i32
    return %arg0, %c0_i32 : i32, i32
  }
  func.func @transform_1(%arg0: i32) -> (i32, i32) {
    %c0_i32 = arith.constant 0 : i32
    %c0_i32_0 = arith.constant 0 : i32
    return %arg0, %c0_i32 : i32, i32
  }
  func.func @transform_2(%arg0: i32) -> (i32, i32) {
    %c0_i32 = arith.constant 0 : i32
    %c0_i32_0 = arith.constant 0 : i32
    %c0_i32_1 = arith.constant 0 : i32
    return %c0_i32, %c0_i32_0 : i32, i32
  }
  func.func @transform_3(%arg0: i32) -> (i32, i32) {
    %c0_i32 = arith.constant 0 : i32
    %c0_i32_0 = arith.constant 0 : i32
    return %arg0, %c0_i32 : i32, i32
  }
}

</mosaic_0001>

<llo_original>
// kernel: global_mask_layer.1
$region0: #{global_mask_layer.1}
  #allocation0 [shape = 'u32[]', space=smem, size = 0x4, offset = 0x4, fixed_abs, tag = 'smem constant byte address 0x4 - core index']
  #allocation1 [shape = 'u32[72,128]{1,0:T(1,128)}', space=vmem, size = 0x9000, scoped, tag = 'internal scratch']
  %s0 = inlined_call_operand.vmem [shape: s32[6,4], index: 0, kind: input, shape index: {}]
  %s1 = inlined_call_operand.vmem [shape: f32[6,128], index: 1, kind: input, shape index: {}]
  %s2 = inlined_call_operand.vmem [shape: f32[8,128], index: 2, kind: input, shape index: {}]
  %s3 = inlined_call_operand.vmem [shape: f32[6,128], index: 3, kind: output, shape index: {}]
  %s4 = sld [smem:[#allocation0]]
  $region22: #{global_mask_layer.1} parent=0
    _
  %s6 = ssub.s32 1, %s4
  %s7 = scalar_select 0, %s6, %s4
  // Predicated region
  $region2: #{global_mask_layer.1} parent=0 // pred_check
    _
  $region3: #{global_mask_layer.1} parent=0 // pred_check_branch
    %9 = sbr.rel (0) target = $region5
  $region4: #{global_mask_layer.1} parent=0 // pred_region
    _
  $region5: #{global_mask_layer.1} parent=0 // pred_fallthru
    _
  // Predicated region
  $region6: #{global_mask_layer.1} parent=0 // pred_check
    _
  $region7: #{global_mask_layer.1} parent=0 // pred_check_branch
    %11 = sbr.rel (0) target = $region9
  $region8: #{global_mask_layer.1} parent=0 // pred_region
    _
  $region9: #{global_mask_layer.1} parent=0 // pred_fallthru
    _
  // Predicated region
  $region10: #{global_mask_layer.1} parent=0 // pred_check
    _
  $region11: #{global_mask_layer.1} parent=0 // pred_check_branch
    %13 = sbr.rel (0) target = $region13
  $region12: #{global_mask_layer.1} parent=0 // pred_region
    _
  $region13: #{global_mask_layer.1} parent=0 // pred_fallthru
    _
  %v14 = vld [vmem:[%s0] sm:$0xff]
  %v15 = vld [vmem:[%s2] sm:$0xff]
  %v16 = vlaneseq
  %v17 = vand.u32 %v16, 127
  %18 = vset.pattern.permute.xlu0 0
  %19 = vperm.xlu0 %18, %v14
  %v20 = vpop.permute.xlu0 %19
  %vm21 = vcmp.eq.s32.totalorder %v20, %v17
  %v22 = vsel %vm21, 1, 0
  %v23 = vcvt.s32.f32 %v22
  %24 = vset.pattern.permute.xlu0 1
  %25 = vperm.xlu0 %24, %v14
  %v26 = vpop.permute.xlu0 %25
  %vm27 = vcmp.eq.s32.totalorder %v26, %v17
  %v28 = vsel %vm27, 1, 0
  %v29 = vcvt.s32.f32 %v28
  %30 = vset.pattern.permute.xlu0 2
  %31 = vperm.xlu0 %30, %v14
  %v32 = vpop.permute.xlu0 %31
  %vm33 = vcmp.eq.s32.totalorder %v32, %v17
  %v34 = vsel %vm33, 1, 0
  %v35 = vcvt.s32.f32 %v34
  %36 = vset.pattern.permute.xlu0 3
  %37 = vperm.xlu0 %36, %v14
  %v38 = vpop.permute.xlu0 %37
  %vm39 = vcmp.eq.s32.totalorder %v38, %v17
  %v40 = vsel %vm39, 1, 0
  %v41 = vcvt.s32.f32 %v40
  %43 = vrot.lane.b32.xlu0 %v29, 2
  %v44 = vpop.permute.xlu0 %43
  %47 = vrot.lane.b32.xlu0 %v35, 4
  %v48 = vpop.permute.xlu0 %47
  %51 = vrot.lane.b32.xlu0 %v41, 6
  %v52 = vpop.permute.xlu0 %51
  %vm54 = vcmask 15360
  %v55 = vsel %vm54, %v23, %v44
  %vm56 = vcmask 31744
  %v57 = vsel %vm56, %v55, %v48
  %vm58 = vcmask 48128
  %v59 = vsel %vm58, %v57, %v52
  %vm60 = vcmask 64512
  %v62 = vsel %vm60, %v59, 0
  %64 = vmatpush.msra.mxu0 0.0
  %65 = vmatpush.msra.mxu0 0.0
  %66 = vmatpush.msra.mxu0 0.0
  %67 = vmatpush.msra.mxu0 0.0
  %68 = vmatpush.msra.mxu0 0.0
  %69 = vmatpush.msra.mxu0 0.0
  %70 = vmatpush.msra.mxu0 0.0
  %71 = vmatpush.msra.mxu0 0.0
  %72 = vmatpush.msra.mxu0 0.0
  %73 = vmatpush.msra.mxu0 0.0
  %74 = vmatpush.msra.mxu0 0.0
  %75 = vmatpush.msra.mxu0 0.0
  %76 = vmatpush.msra.mxu0 0.0
  %77 = vmatpush.msra.mxu0 0.0
  %78 = vmatpush.msra.mxu0 0.0
  %79 = vmatpush.msra.mxu0 %v15
  %80 = vmatmul.f32.gmra.mxu0 %v62
  %v81 = vpop.f32.mrf.mxu0
  %v82 = vadd.f32 0.0, %v81
  %83 = vdwg.mxu0
  %v84 = vld [vmem:[%s1] sm:$0xff]
  %v85 = vmul.f32 %v84, %v82
  %86 = vst [vmem:[%s3] sm:$0xff] %v85
  // Predicated region
  $region14: #{global_mask_layer.1} parent=0 // pred_check
    _
  $region15: #{global_mask_layer.1} parent=0 // pred_check_branch
    %88 = sbr.rel (0) target = $region17
  $region16: #{global_mask_layer.1} parent=0 // pred_region
    _
  $region17: #{global_mask_layer.1} parent=0 // pred_fallthru
    _
  // Predicated region
  $region18: #{global_mask_layer.1} parent=0 // pred_check
    _
  $region19: #{global_mask_layer.1} parent=0 // pred_check_branch
    %90 = sbr.rel (0) target = $region21
  $region20: #{global_mask_layer.1} parent=0 // pred_region
    _
  $region21: #{global_mask_layer.1} parent=0 // pred_fallthru
    _

</llo_original>
